<compile_context>
chip_gen: v7x
topology: tpu7x:2x2x1
jax: 0.10.0
libtpu: 0.0.40
codegen_flags: <defaults>
</compile_context>

<pallas_src>
import jax
import jax.numpy as jnp
from jax.experimental import pallas as pl
from jax.experimental.pallas import tpu as pltpu


def _dummy_model_kernel(ids_ref, table_ref, out_ref):
    # ids_ref:   (Np,)    int32   SMEM token ids (pad rows, if any, hold 0)
    # table_ref: (Vr, Vp) float32 VMEM fused table: embed @ W^T + b, zero-padded
    # out_ref:   (Np, Vp) float32 VMEM logits, lane-dense (Vp multiple of 128)
    n = out_ref.shape[0]

    def body(i, carry):
        idx = ids_ref[i]                                       # SMEM scalar load
        # Exact f32 row gather: dynamic sublane read, full-lane (128-wide) store.
        out_ref[pl.ds(i, 1), :] = table_ref[pl.ds(idx, 1), :]
        return carry

    jax.lax.fori_loop(0, n, body, 0, unroll=True)


def make_dummy_model(embed_table, lin_weight, lin_bias):
    """Precompute the fused, lane-dense table ONCE; return a jitted forward."""
    V, D = embed_table.shape

    Vp = max(128, pl.cdiv(V, 128) * 128)       # lane dim -> multiple of 128
    Vr = max(8, pl.cdiv(V, 8) * 8)             # table rows -> multiple of 8

    # Exact fusion of embedding lookup + linear + bias (lookup == one-hot matmul).
    table = (embed_table.astype(jnp.float32) @ lin_weight.astype(jnp.float32).T
             + lin_bias.astype(jnp.float32))                        # (V, V)
    table_p = jnp.zeros((Vr, Vp), jnp.float32).at[:V, :V].set(table)

    @jax.jit
    def forward(x):
        """x: (B, S) int token ids.  Returns (B, S, V) float32 logits."""
        B, S = x.shape
        N = B * S
        Np = max(8, pl.cdiv(N, 8) * 8)         # output rows -> multiple of 8

        ids = x.reshape(N).astype(jnp.int32)
        if Np != N:                            # static check; no-op when N % 8 == 0
            ids = jnp.concatenate([ids, jnp.zeros((Np - N,), jnp.int32)])

        cost = pl.CostEstimate(
            flops=0,
            transcendentals=0,
            bytes_accessed=Np * 4 + Vr * Vp * 4 + Np * Vp * 4,
        )

        out = pl.pallas_call(
            _dummy_model_kernel,
            out_shape=jax.ShapeDtypeStruct((Np, Vp), jnp.float32),
            in_specs=[
                pl.BlockSpec(memory_space=pltpu.SMEM),   # ids (scalar path)
                pl.BlockSpec(memory_space=pltpu.VMEM),   # fused padded table
            ],
            out_specs=pl.BlockSpec(memory_space=pltpu.VMEM),
            cost_estimate=cost,
        )(ids, table_p)

        return out[:N, :V].reshape(B, S, V)

    return forward


if __name__ == "__main__":
    vocab, dim = 10, 4
    B, S = 2, 8

    key = jax.random.PRNGKey(0)
    k_emb, k_w, k_b, k_x = jax.random.split(key, 4)

    # Deterministic parameter init (mimics nn.Embedding ~ N(0,1),
    # nn.Linear ~ U(-1/sqrt(in), 1/sqrt(in))).
    embed_table = jax.random.normal(k_emb, (vocab, dim), dtype=jnp.float32)
    bound = 1.0 / jnp.sqrt(jnp.float32(dim))
    lin_weight = jax.random.uniform(k_w, (vocab, dim), dtype=jnp.float32,
                                    minval=-bound, maxval=bound)
    lin_bias = jax.random.uniform(k_b, (vocab,), dtype=jnp.float32,
                                  minval=-bound, maxval=bound)

    x = jax.random.randint(k_x, (B, S), 0, vocab, dtype=jnp.int32)

    forward = make_dummy_model(embed_table, lin_weight, lin_bias)
    logits = forward(x)
    logits = jax.block_until_ready(logits)

    # Reference check in plain JAX (same math as the PyTorch module).
    ref = embed_table[x] @ lin_weight.T + lin_bias
    assert logits.shape == (B, S, vocab)
    assert jnp.allclose(logits, ref, atol=1e-5, rtol=1e-5)

    print("KERNEL_OK")
</pallas_src>

<mosaic_0001>
module attributes {stable_mosaic.version = 11 : i64} {
  func.func @_dummy_model_kernel(%arg0: memref<16xi32, #tpu.memory_space<smem>>, %arg1: memref<16x128xf32, #tpu.memory_space<vmem>>, %arg2: memref<16x128xf32, #tpu.memory_space<vmem>>) attributes {dimension_semantics = [], scalar_prefetch = 0 : i64, scratch_operands = 0 : i64, tpu.core_type = #tpu.core_type<tc>} {
    %c0_i32 = arith.constant 0 : i32
    %0 = arith.index_cast %c0_i32 : i32 to index
    %1 = memref.load %arg0[%0] : memref<16xi32, #tpu.memory_space<smem>>
    %2 = arith.index_cast %1 : i32 to index
    %c0 = arith.constant 0 : index
    %3 = vector.load %arg1[%2, %c0] : memref<16x128xf32, #tpu.memory_space<vmem>>, vector<1x128xf32>
    %4 = arith.index_cast %c0_i32 : i32 to index
    %c0_0 = arith.constant 0 : index
    %5 = vector.load %arg2[%4, %c0_0] : memref<16x128xf32, #tpu.memory_space<vmem>>, vector<1x128xf32>
    tpu.vector_store %arg2[%4, %c0_0], %3 {strides = array<i32>} : memref<16x128xf32, #tpu.memory_space<vmem>>, vector<1x128xf32>,
    %c1_i32 = arith.constant 1 : i32
    %6 = arith.index_cast %c1_i32 : i32 to index
    %7 = memref.load %arg0[%6] : memref<16xi32, #tpu.memory_space<smem>>
    %8 = arith.index_cast %7 : i32 to index
    %c0_1 = arith.constant 0 : index
    %9 = vector.load %arg1[%8, %c0_1] : memref<16x128xf32, #tpu.memory_space<vmem>>, vector<1x128xf32>
    %10 = arith.index_cast %c1_i32 : i32 to index
    %c0_2 = arith.constant 0 : index
    %11 = vector.load %arg2[%10, %c0_2] : memref<16x128xf32, #tpu.memory_space<vmem>>, vector<1x128xf32>
    tpu.vector_store %arg2[%10, %c0_2], %9 {strides = array<i32>} : memref<16x128xf32, #tpu.memory_space<vmem>>, vector<1x128xf32>,
    %c2_i32 = arith.constant 2 : i32
    %12 = arith.index_cast %c2_i32 : i32 to index
    %13 = memref.load %arg0[%12] : memref<16xi32, #tpu.memory_space<smem>>
    %14 = arith.index_cast %13 : i32 to index
    %c0_3 = arith.constant 0 : index
    %15 = vector.load %arg1[%14, %c0_3] : memref<16x128xf32, #tpu.memory_space<vmem>>, vector<1x128xf32>
    %16 = arith.index_cast %c2_i32 : i32 to index
    %c0_4 = arith.constant 0 : index
    %17 = vector.load %arg2[%16, %c0_4] : memref<16x128xf32, #tpu.memory_space<vmem>>, vector<1x128xf32>
    tpu.vector_store %arg2[%16, %c0_4], %15 {strides = array<i32>} : memref<16x128xf32, #tpu.memory_space<vmem>>, vector<1x128xf32>,
    %c3_i32 = arith.constant 3 : i32
    %18 = arith.index_cast %c3_i32 : i32 to index
    %19 = memref.load %arg0[%18] : memref<16xi32, #tpu.memory_space<smem>>
    %20 = arith.index_cast %19 : i32 to index
    %c0_5 = arith.constant 0 : index
    %21 = vector.load %arg1[%20, %c0_5] : memref<16x128xf32, #tpu.memory_space<vmem>>, vector<1x128xf32>
    %22 = arith.index_cast %c3_i32 : i32 to index
    %c0_6 = arith.constant 0 : index
    %23 = vector.load %arg2[%22, %c0_6] : memref<16x128xf32, #tpu.memory_space<vmem>>, vector<1x128xf32>
    tpu.vector_store %arg2[%22, %c0_6], %21 {strides = array<i32>} : memref<16x128xf32, #tpu.memory_space<vmem>>, vector<1x128xf32>,
    %c4_i32 = arith.constant 4 : i32
    %24 = arith.index_cast %c4_i32 : i32 to index
    %25 = memref.load %arg0[%24] : memref<16xi32, #tpu.memory_space<smem>>
    %26 = arith.index_cast %25 : i32 to index
    %c0_7 = arith.constant 0 : index
    %27 = vector.load %arg1[%26, %c0_7] : memref<16x128xf32, #tpu.memory_space<vmem>>, vector<1x128xf32>
    %28 = arith.index_cast %c4_i32 : i32 to index
    %c0_8 = arith.constant 0 : index
    %29 = vector.load %arg2[%28, %c0_8] : memref<16x128xf32, #tpu.memory_space<vmem>>, vector<1x128xf32>
    tpu.vector_store %arg2[%28, %c0_8], %27 {strides = array<i32>} : memref<16x128xf32, #tpu.memory_space<vmem>>, vector<1x128xf32>,
    %c5_i32 = arith.constant 5 : i32
    %30 = arith.index_cast %c5_i32 : i32 to index
    %31 = memref.load %arg0[%30] : memref<16xi32, #tpu.memory_space<smem>>
    %32 = arith.index_cast %31 : i32 to index
    %c0_9 = arith.constant 0 : index
    %33 = vector.load %arg1[%32, %c0_9] : memref<16x128xf32, #tpu.memory_space<vmem>>, vector<1x128xf32>
    %34 = arith.index_cast %c5_i32 : i32 to index
    %c0_10 = arith.constant 0 : index
    %35 = vector.load %arg2[%34, %c0_10] : memref<16x128xf32, #tpu.memory_space<vmem>>, vector<1x128xf32>
    tpu.vector_store %arg2[%34, %c0_10], %33 {strides = array<i32>} : memref<16x128xf32, #tpu.memory_space<vmem>>, vector<1x128xf32>,
    %c6_i32 = arith.constant 6 : i32
    %36 = arith.index_cast %c6_i32 : i32 to index
    %37 = memref.load %arg0[%36] : memref<16xi32, #tpu.memory_space<smem>>
    %38 = arith.index_cast %37 : i32 to index
    %c0_11 = arith.constant 0 : index
    %39 = vector.load %arg1[%38, %c0_11] : memref<16x128xf32, #tpu.memory_space<vmem>>, vector<1x128xf32>
    %40 = arith.index_cast %c6_i32 : i32 to index
    %c0_12 = arith.constant 0 : index
    %41 = vector.load %arg2[%40, %c0_12] : memref<16x128xf32, #tpu.memory_space<vmem>>, vector<1x128xf32>
    tpu.vector_store %arg2[%40, %c0_12], %39 {strides = array<i32>} : memref<16x128xf32, #tpu.memory_space<vmem>>, vector<1x128xf32>,
    %c7_i32 = arith.constant 7 : i32
    %42 = arith.index_cast %c7_i32 : i32 to index
    %43 = memref.load %arg0[%42] : memref<16xi32, #tpu.memory_space<smem>>
    %44 = arith.index_cast %43 : i32 to index
    %c0_13 = arith.constant 0 : index
    %45 = vector.load %arg1[%44, %c0_13] : memref<16x128xf32, #tpu.memory_space<vmem>>, vector<1x128xf32>
    %46 = arith.index_cast %c7_i32 : i32 to index
    %c0_14 = arith.constant 0 : index
    %47 = vector.load %arg2[%46, %c0_14] : memref<16x128xf32, #tpu.memory_space<vmem>>, vector<1x128xf32>
    tpu.vector_store %arg2[%46, %c0_14], %45 {strides = array<i32>} : memref<16x128xf32, #tpu.memory_space<vmem>>, vector<1x128xf32>,
    %c8_i32 = arith.constant 8 : i32
    %48 = arith.index_cast %c8_i32 : i32 to index
    %49 = memref.load %arg0[%48] : memref<16xi32, #tpu.memory_space<smem>>
    %50 = arith.index_cast %49 : i32 to index
    %c0_15 = arith.constant 0 : index
    %51 = vector.load %arg1[%50, %c0_15] : memref<16x128xf32, #tpu.memory_space<vmem>>, vector<1x128xf32>
    %52 = arith.index_cast %c8_i32 : i32 to index
    %c0_16 = arith.constant 0 : index
    %53 = vector.load %arg2[%52, %c0_16] : memref<16x128xf32, #tpu.memory_space<vmem>>, vector<1x128xf32>
    tpu.vector_store %arg2[%52, %c0_16], %51 {strides = array<i32>} : memref<16x128xf32, #tpu.memory_space<vmem>>, vector<1x128xf32>,
    %c9_i32 = arith.constant 9 : i32
    %54 = arith.index_cast %c9_i32 : i32 to index
    %55 = memref.load %arg0[%54] : memref<16xi32, #tpu.memory_space<smem>>
    %56 = arith.index_cast %55 : i32 to index
    %c0_17 = arith.constant 0 : index
    %57 = vector.load %arg1[%56, %c0_17] : memref<16x128xf32, #tpu.memory_space<vmem>>, vector<1x128xf32>
    %58 = arith.index_cast %c9_i32 : i32 to index
    %c0_18 = arith.constant 0 : index
    %59 = vector.load %arg2[%58, %c0_18] : memref<16x128xf32, #tpu.memory_space<vmem>>, vector<1x128xf32>
    tpu.vector_store %arg2[%58, %c0_18], %57 {strides = array<i32>} : memref<16x128xf32, #tpu.memory_space<vmem>>, vector<1x128xf32>,
    %c10_i32 = arith.constant 10 : i32
    %60 = arith.index_cast %c10_i32 : i32 to index
    %61 = memref.load %arg0[%60] : memref<16xi32, #tpu.memory_space<smem>>
    %62 = arith.index_cast %61 : i32 to index
    %c0_19 = arith.constant 0 : index
    %63 = vector.load %arg1[%62, %c0_19] : memref<16x128xf32, #tpu.memory_space<vmem>>, vector<1x128xf32>
    %64 = arith.index_cast %c10_i32 : i32 to index
    %c0_20 = arith.constant 0 : index
    %65 = vector.load %arg2[%64, %c0_20] : memref<16x128xf32, #tpu.memory_space<vmem>>, vector<1x128xf32>
    tpu.vector_store %arg2[%64, %c0_20], %63 {strides = array<i32>} : memref<16x128xf32, #tpu.memory_space<vmem>>, vector<1x128xf32>,
    %c11_i32 = arith.constant 11 : i32
    %66 = arith.index_cast %c11_i32 : i32 to index
    %67 = memref.load %arg0[%66] : memref<16xi32, #tpu.memory_space<smem>>
    %68 = arith.index_cast %67 : i32 to index
    %c0_21 = arith.constant 0 : index
    %69 = vector.load %arg1[%68, %c0_21] : memref<16x128xf32, #tpu.memory_space<vmem>>, vector<1x128xf32>
    %70 = arith.index_cast %c11_i32 : i32 to index
    %c0_22 = arith.constant 0 : index
    %71 = vector.load %arg2[%70, %c0_22] : memref<16x128xf32, #tpu.memory_space<vmem>>, vector<1x128xf32>
    tpu.vector_store %arg2[%70, %c0_22], %69 {strides = array<i32>} : memref<16x128xf32, #tpu.memory_space<vmem>>, vector<1x128xf32>,
    %c12_i32 = arith.constant 12 : i32
    %72 = arith.index_cast %c12_i32 : i32 to index
    %73 = memref.load %arg0[%72] : memref<16xi32, #tpu.memory_space<smem>>
    %74 = arith.index_cast %73 : i32 to index
    %c0_23 = arith.constant 0 : index
    %75 = vector.load %arg1[%74, %c0_23] : memref<16x128xf32, #tpu.memory_space<vmem>>, vector<1x128xf32>
    %76 = arith.index_cast %c12_i32 : i32 to index
    %c0_24 = arith.constant 0 : index
    %77 = vector.load %arg2[%76, %c0_24] : memref<16x128xf32, #tpu.memory_space<vmem>>, vector<1x128xf32>
    tpu.vector_store %arg2[%76, %c0_24], %75 {strides = array<i32>} : memref<16x128xf32, #tpu.memory_space<vmem>>, vector<1x128xf32>,
    %c13_i32 = arith.constant 13 : i32
    %78 = arith.index_cast %c13_i32 : i32 to index
    %79 = memref.load %arg0[%78] : memref<16xi32, #tpu.memory_space<smem>>
    %80 = arith.index_cast %79 : i32 to index
    %c0_25 = arith.constant 0 : index
    %81 = vector.load %arg1[%80, %c0_25] : memref<16x128xf32, #tpu.memory_space<vmem>>, vector<1x128xf32>
    %82 = arith.index_cast %c13_i32 : i32 to index
    %c0_26 = arith.constant 0 : index
    %83 = vector.load %arg2[%82, %c0_26] : memref<16x128xf32, #tpu.memory_space<vmem>>, vector<1x128xf32>
    tpu.vector_store %arg2[%82, %c0_26], %81 {strides = array<i32>} : memref<16x128xf32, #tpu.memory_space<vmem>>, vector<1x128xf32>,
    %c14_i32 = arith.constant 14 : i32
    %84 = arith.index_cast %c14_i32 : i32 to index
    %85 = memref.load %arg0[%84] : memref<16xi32, #tpu.memory_space<smem>>
    %86 = arith.index_cast %85 : i32 to index
    %c0_27 = arith.constant 0 : index
    %87 = vector.load %arg1[%86, %c0_27] : memref<16x128xf32, #tpu.memory_space<vmem>>, vector<1x128xf32>
    %88 = arith.index_cast %c14_i32 : i32 to index
    %c0_28 = arith.constant 0 : index
    %89 = vector.load %arg2[%88, %c0_28] : memref<16x128xf32, #tpu.memory_space<vmem>>, vector<1x128xf32>
    tpu.vector_store %arg2[%88, %c0_28], %87 {strides = array<i32>} : memref<16x128xf32, #tpu.memory_space<vmem>>, vector<1x128xf32>,
    %c15_i32 = arith.constant 15 : i32
    %90 = arith.index_cast %c15_i32 : i32 to index
    %91 = memref.load %arg0[%90] : memref<16xi32, #tpu.memory_space<smem>>
    %92 = arith.index_cast %91 : i32 to index
    %c0_29 = arith.constant 0 : index
    %93 = vector.load %arg1[%92, %c0_29] : memref<16x128xf32, #tpu.memory_space<vmem>>, vector<1x128xf32>
    %94 = arith.index_cast %c15_i32 : i32 to index
    %c0_30 = arith.constant 0 : index
    %95 = vector.load %arg2[%94, %c0_30] : memref<16x128xf32, #tpu.memory_space<vmem>>, vector<1x128xf32>
    tpu.vector_store %arg2[%94, %c0_30], %93 {strides = array<i32>} : memref<16x128xf32, #tpu.memory_space<vmem>>, vector<1x128xf32>,
    %c16_i32 = arith.constant 16 : i32
    return
  }
}

</mosaic_0001>

<llo_original>
// kernel: forward.1
$region0: #{forward.1}
  #allocation0 [shape = 'u32[]', space=smem, size = 0x4, offset = 0x4, fixed_abs, tag = 'smem constant byte address 0x4 - core index']
  #allocation1 [shape = 'u32[144,128]{1,0:T(1,128)}', space=vmem, size = 0x12000, scoped, tag = 'internal scratch']
  %s0 = inlined_call_operand.vmem [shape: s32[16], index: 0, kind: input, shape index: {}]
  %s1 = inlined_call_operand.hbm [shape: f32[16,128], index: 1, kind: input, shape index: {}]
  %s2 = inlined_call_operand.vmem [shape: f32[16,128], index: 2, kind: output, shape index: {}]
  %s3 = sld [smem:[#allocation0]]
  $region26: #{forward.1} parent=0
    _
  %s5 = ssub.s32 1, %s3
  %s6 = scalar_select 0, %s5, %s3
  $region1: #{forward.1} parent=0
    #allocation2 [shape = 'u8[512]{0}', space=smem, size = 0x200, scoped, tag = 'input window, operand 0, single buffered']
    #allocation3 [shape = 's32[1]{0}', space=sflag, size = 0x4, scoped, tag = 'scoped memory for forward.1']
    #allocation4 [shape = 's32[1]{0}', space=sflag, size = 0x4, scoped, tag = 'scoped memory for forward.1']
    #allocation5 [shape = 'u8[8192]{0}', space=vmem, size = 0x2000, scoped, tag = 'input window, operand 1, single buffered']
    %7 = vsyncpa [#allocation4], 0
    %8 = vsyncpa [#allocation3], 0
    // Predicated region
    $region2: #{forward.1} parent=1 // pred_check
      _
    $region3: #{forward.1} parent=1 // pred_check_branch
      %10 = sbr.rel (0) target = $region5
    $region4: #{forward.1} parent=1 // pred_region
      %s12 = ssub.s32 16, 16
      %13 = vsyncadd [#allocation4], %s12
      %s15 = sshll.u32 %s0, 4
      %s16 = int_to_ptr.vmem [resolvable:$true] %s15
      %18 = dma.vmem_to_smem %s16, 16, [#allocation2], [#allocation4]
    $region5: #{forward.1} parent=1 // pred_fallthru
      _
    // Predicated region
    $region6: #{forward.1} parent=1 // pred_check
      _
    $region7: #{forward.1} parent=1 // pred_check_branch
      %20 = sbr.rel (0) target = $region9
    $region8: #{forward.1} parent=1 // pred_region
      %s22 = ssub.s32 256, 256
      %23 = vsyncadd [#allocation3], %s22
      %s24 = sshll.u32 [#allocation5], 4
      %s25 = int_to_ptr.vmem [resolvable:$true] %s24
      %30 = dma.hbm_to_vmem [thread:$0]  %s1, 256, %s25, [#allocation3], 128, 128, 8
    $region9: #{forward.1} parent=1 // pred_fallthru
      _
    // Predicated region
    $region10: #{forward.1} parent=1 // pred_check
      _
    $region11: #{forward.1} parent=1 // pred_check_branch
      %32 = sbr.rel (0) target = $region13
    $region12: #{forward.1} parent=1 // pred_region
      %33 = dma.done [#allocation4], 16
    $region13: #{forward.1} parent=1 // pred_fallthru
      _
    // Predicated region
    $region14: #{forward.1} parent=1 // pred_check
      _
    $region15: #{forward.1} parent=1 // pred_check_branch
      %35 = sbr.rel (0) target = $region17
    $region16: #{forward.1} parent=1 // pred_region
      %36 = dma.done [#allocation3], 256
    $region17: #{forward.1} parent=1 // pred_fallthru
      _
    %37 = sfence
    %s38 = sld [smem:[#allocation2]]
    %s39 = scalar_lea.vmem [#allocation5], %s38
    %v40 = vld [vmem:[%s39] sm:$0x1]
    %41 = vst [vmem:[%s2] sm:$0x1] %v40
    %s42 = sld [smem:[#allocation2 + $0x1]]
    %s43 = scalar_lea.vmem [#allocation5], %s42
    %v44 = vld [vmem:[%s43] sm:$0x1]
    %45 = vst [vmem:[%s2 + $0x1] sm:$0x1] %v44
    %s46 = sld [smem:[#allocation2 + $0x2]]
    %s47 = scalar_lea.vmem [#allocation5], %s46
    %v48 = vld [vmem:[%s47] sm:$0x1]
    %49 = vst [vmem:[%s2 + $0x2] sm:$0x1] %v48
    %s50 = sld [smem:[#allocation2 + $0x3]]
    %s51 = scalar_lea.vmem [#allocation5], %s50
    %v52 = vld [vmem:[%s51] sm:$0x1]
    %53 = vst [vmem:[%s2 + $0x3] sm:$0x1] %v52
    %s54 = sld [smem:[#allocation2 + $0x4]]
    %s55 = scalar_lea.vmem [#allocation5], %s54
    %v56 = vld [vmem:[%s55] sm:$0x1]
    %57 = vst [vmem:[%s2 + $0x4] sm:$0x1] %v56
    %s58 = sld [smem:[#allocation2 + $0x5]]
    %s59 = scalar_lea.vmem [#allocation5], %s58
    %v60 = vld [vmem:[%s59] sm:$0x1]
    %61 = vst [vmem:[%s2 + $0x5] sm:$0x1] %v60
    %s62 = sld [smem:[#allocation2 + $0x6]]
    %s63 = scalar_lea.vmem [#allocation5], %s62
    %v64 = vld [vmem:[%s63] sm:$0x1]
    %65 = vst [vmem:[%s2 + $0x6] sm:$0x1] %v64
    %s66 = sld [smem:[#allocation2 + $0x7]]
    %s67 = scalar_lea.vmem [#allocation5], %s66
    %v68 = vld [vmem:[%s67] sm:$0x1]
    %69 = vst [vmem:[%s2 + $0x7] sm:$0x1] %v68
    %s70 = sld [smem:[#allocation2 + $0x8]]
    %s71 = scalar_lea.vmem [#allocation5], %s70
    %v72 = vld [vmem:[%s71] sm:$0x1]
    %73 = vst [vmem:[%s2 + $0x8] sm:$0x1] %v72
    %s74 = sld [smem:[#allocation2 + $0x9]]
    %s75 = scalar_lea.vmem [#allocation5], %s74
    %v76 = vld [vmem:[%s75] sm:$0x1]
    %77 = vst [vmem:[%s2 + $0x9] sm:$0x1] %v76
    %s78 = sld [smem:[#allocation2 + $0xa]]
    %s79 = scalar_lea.vmem [#allocation5], %s78
    %v80 = vld [vmem:[%s79] sm:$0x1]
    %81 = vst [vmem:[%s2 + $0xa] sm:$0x1] %v80
    %s82 = sld [smem:[#allocation2 + $0xb]]
    %s83 = scalar_lea.vmem [#allocation5], %s82
    %v84 = vld [vmem:[%s83] sm:$0x1]
    %85 = vst [vmem:[%s2 + $0xb] sm:$0x1] %v84
    %s86 = sld [smem:[#allocation2 + $0xc]]
    %s87 = scalar_lea.vmem [#allocation5], %s86
    %v88 = vld [vmem:[%s87] sm:$0x1]
    %89 = vst [vmem:[%s2 + $0xc] sm:$0x1] %v88
    %s90 = sld [smem:[#allocation2 + $0xd]]
    %s91 = scalar_lea.vmem [#allocation5], %s90
    %v92 = vld [vmem:[%s91] sm:$0x1]
    %93 = vst [vmem:[%s2 + $0xd] sm:$0x1] %v92
    %s94 = sld [smem:[#allocation2 + $0xe]]
    %s95 = scalar_lea.vmem [#allocation5], %s94
    %v96 = vld [vmem:[%s95] sm:$0x1]
    %97 = vst [vmem:[%s2 + $0xe] sm:$0x1] %v96
    %s98 = sld [smem:[#allocation2 + $0xf]]
    %s99 = scalar_lea.vmem [#allocation5], %s98
    %v100 = vld [vmem:[%s99] sm:$0x1]
    %101 = vst [vmem:[%s2 + $0xf] sm:$0x1] %v100
    // Predicated region
    $region18: #{forward.1} parent=1 // pred_check
      _
    $region19: #{forward.1} parent=1 // pred_check_branch
      %103 = sbr.rel (0) target = $region21
    $region20: #{forward.1} parent=1 // pred_region
      _
    $region21: #{forward.1} parent=1 // pred_fallthru
      _
    // Predicated region
    $region22: #{forward.1} parent=1 // pred_check
      _
    $region23: #{forward.1} parent=1 // pred_check_branch
      %105 = sbr.rel (0) target = $region25
    $region24: #{forward.1} parent=1 // pred_region
      _
    $region25: #{forward.1} parent=1 // pred_fallthru
      _
    %106 = vsyncpa [#allocation3], 1
    %107 = vsyncpa [#allocation4], 1

</llo_original>
